<compile_context>
chip_gen: v6e
topology: v6e:2x2x1
jax: 0.10.0
libtpu: 0.0.40
codegen_flags: <defaults>
</compile_context>

<pallas_src>
import jax
import jax.numpy as jnp
from jax.experimental import pallas as pl
from jax.experimental.pallas import tpu as pltpu


def _round_up(x, m):
    return (x + m - 1) // m * m


def _generation_defaults():
    """(tile_rows, k_tile, vmem_limit_bytes) tuned per TPU generation."""
    try:
        kind = jax.devices()[0].device_kind.lower()
    except Exception:  # pragma: no cover - unknown backend
        kind = ""
    if "v7" in kind or "7x" in kind:
        # v7x: 64 MiB VMEM/TC -> leave headroom for compiler scratch; HBM 3.2 TB/s.
        return 256, 2048, 48 * 1024 * 1024
    if "v6" in kind or "v5" in kind:
        # v5e/v6e: 128 MiB VMEM -> large row tiles for DMA efficiency (85%+ roofline).
        return 512, 2048, 96 * 1024 * 1024
    # Unknown / interpret backend: conservative.
    return 256, 1024, 48 * 1024 * 1024


# ---------------------------------------------------------------------------
# Kernels
# ---------------------------------------------------------------------------
def _layer1_body(adj_ref, z1_ref, dis_ref, w1_ref, b1_ref, mask_ref, z2_ref, acc_ref):
    """Layer 1 + dropout, K-tiled.

    adj_ref : (TM, TK)  int8   rows x K-tile of (A + self loops)
    z1_ref  : (TK, Cp)  bf16   dis ⊙ X, K-tile
    dis_ref : (TM, 1)   f32    D^{-1/2} for the destination rows
    w1_ref  : (Cp, Hp)  f32
    b1_ref  : (1,  Hp)  f32
    mask_ref: (TM, Hp)  bf16   dropout scale mask {0, 2} (or None when eval)
    z2_ref  : (TM, Hp)  bf16   OUT: dis ⊙ dropout(h1)   (layer-2 matmul operand)
    acc_ref : (TM, Cp)  f32    scratch accumulator for (A+I) @ (dis ⊙ X)
    """
    k = pl.program_id(1)

    @pl.when(k == 0)
    def _():
        acc_ref[...] = jnp.zeros_like(acc_ref)

    # Dominant N^2 matmul: int8 adj stream cast to bf16 on the VPU (free under
    # DMA wait), contracting over the K-tile with only Cp result columns.
    acc_ref[...] += jnp.dot(adj_ref[...].astype(jnp.bfloat16), z1_ref[...],
                            preferred_element_type=jnp.float32)

    @pl.when(k == pl.num_programs(1) - 1)
    def _():
        h1 = jnp.dot(acc_ref[...] * dis_ref[...], w1_ref[...],
                     preferred_element_type=jnp.float32) + b1_ref[...]
        if mask_ref is not None:                       # training: dropout(p=0.5)
            h1 = h1 * mask_ref[...].astype(jnp.float32)
        z2_ref[...] = (h1 * dis_ref[...]).astype(z2_ref.dtype)


def gcn_layer1_train_kernel(adj_ref, z1_ref, dis_ref, w1_ref, b1_ref,
                            mask_ref, z2_ref, acc_ref):
    _layer1_body(adj_ref, z1_ref, dis_ref, w1_ref, b1_ref, mask_ref, z2_ref, acc_ref)


def gcn_layer1_eval_kernel(adj_ref, z1_ref, dis_ref, w1_ref, b1_ref,
                           z2_ref, acc_ref):
    _layer1_body(adj_ref, z1_ref, dis_ref, w1_ref, b1_ref, None, z2_ref, acc_ref)


def gcn_layer2_kernel(adj_ref, z2_ref, dis_ref, w2_ref, b2_ref, o_ref, acc_ref):
    """Layer 2, K-tiled: out = (dis ⊙ ((A+I) @ z2)) @ W2 + b2."""
    k = pl.program_id(1)

    @pl.when(k == 0)
    def _():
        acc_ref[...] = jnp.zeros_like(acc_ref)

    acc_ref[...] += jnp.dot(adj_ref[...].astype(jnp.bfloat16), z2_ref[...],
                            preferred_element_type=jnp.float32)

    @pl.when(k == pl.num_programs(1) - 1)
    def _():
        out = jnp.dot(acc_ref[...] * dis_ref[...], w2_ref[...],
                      preferred_element_type=jnp.float32) + b2_ref[...]
        o_ref[...] = out.astype(o_ref.dtype)


# ---------------------------------------------------------------------------
# Wrapper
# ---------------------------------------------------------------------------
def gcn_classifier_forward(x, edge_index, w1, b1, w2, b2, *,
                           dropout_rng=None, training=True,
                           tile_rows=None, k_tile=None, vmem_limit_bytes=None):
    """x: (N, C_in) f32, edge_index: (2, E) int32 [src; dst]. Returns (N, hidden) f32."""
    n, c_in = x.shape
    hidden = w1.shape[1]

    d_tm, d_tk, d_vmem = _generation_defaults()
    tile_rows = d_tm if tile_rows is None else tile_rows
    k_tile = d_tk if k_tile is None else k_tile
    vmem_limit_bytes = d_vmem if vmem_limit_bytes is None else vmem_limit_bytes

    # --- tile sizes (all multiples of 128; VMEM bounded independent of N) ----
    tk = min(_round_up(k_tile, 128), _round_up(n, 128))   # contraction tile
    n_p = _round_up(n, tk)                                 # K-tiles divide padded N
    tm = min(_round_up(tile_rows, 128), tk)                # row tile
    if tk % tm != 0:
        tm = 128                                           # 128 always divides tk
    c_p = _round_up(c_in, 128)                             # lane-dense feature dims
    h_p = _round_up(hidden, 128)
    grid = (n_p // tm, n_p // tk)

    # --- (A + remaining self loops) built directly in int8 -------------------
    # Entries are duplicate-edge counts (exact up to 127 duplicates per pair).
    # PyG add_remaining_self_loops: a self loop is added only where none exists.
    src, dst = edge_index[0], edge_index[1]
    a = jnp.zeros((n_p, n_p), jnp.int8).at[dst, src].add(1)
    diag = jnp.arange(n)
    has_loop = a[diag, diag] > 0
    a = a.at[diag, diag].add(jnp.where(has_loop, 0, 1).astype(jnp.int8))
    deg = a.sum(axis=1, dtype=jnp.float32)                 # row degree incl. self loop
    dis = jnp.where(deg > 0, jax.lax.rsqrt(deg), 0.0)      # 0 for padded nodes
    dis_col = dis[:, None].astype(jnp.float32)             # (n_p, 1)

    # --- padded / pre-scaled operands (all O(N*C) or smaller) ----------------
    x_p = jnp.zeros((n_p, c_p), jnp.float32).at[:n, :c_in].set(x.astype(jnp.float32))
    z1 = (x_p * dis_col).astype(jnp.bfloat16)               # dis ⊙ X (MXU operand)
    w1_p = jnp.zeros((c_p, h_p), jnp.float32).at[:c_in, :hidden].set(w1)
    b1_p = jnp.zeros((1, h_p), jnp.float32).at[0, :hidden].set(b1)
    w2_p = jnp.zeros((h_p, h_p), jnp.float32).at[:hidden, :hidden].set(w2)
    b2_p = jnp.zeros((1, h_p), jnp.float32).at[0, :hidden].set(b2)

    cparams = pltpu.CompilerParams(
        dimension_semantics=("parallel", "arbitrary"),   # rows parallel, K reduction
        vmem_limit_bytes=vmem_limit_bytes,
    )

    row_k = lambda i, k: (i, k)    # adjacency tile
    k_row = lambda i, k: (k, 0)    # K-tiled feature operand
    row0 = lambda i, k: (i, 0)     # per-row operands / outputs (constant over K)
    const = lambda i, k: (0, 0)    # weights / biases (resident)

    # --- kernel 1: layer 1 (+ dropout), emits z2 = dis ⊙ dropout(h1) (bf16) --
    l1_in_specs = [
        pl.BlockSpec((tm, tk), row_k),      # adj int8 (dominant stream)
        pl.BlockSpec((tk, c_p), k_row),     # z1 K-tile
        pl.BlockSpec((tm, 1), row0),        # dis for dst rows
        pl.BlockSpec((c_p, h_p), const),    # W1
        pl.BlockSpec((1, h_p), const),      # b1
    ]
    l1_args = [a, z1, dis_col, w1_p, b1_p]
    if training:
        if dropout_rng is None:
            dropout_rng = jax.random.PRNGKey(0)
        keep = jax.random.bernoulli(dropout_rng, 0.5, (n_p, h_p))
        mask = jnp.where(keep, 2.0, 0.0).astype(jnp.bfloat16)   # {0,2} exact in bf16
        l1_in_specs.append(pl.BlockSpec((tm, h_p), row0))
        l1_args.append(mask)
        kernel1 = gcn_layer1_train_kernel
    else:
        kernel1 = gcn_layer1_eval_kernel

    z2 = pl.pallas_call(
        kernel1,
        out_shape=jax.ShapeDtypeStruct((n_p, h_p), jnp.bfloat16),
        grid=grid,
        in_specs=l1_in_specs,
        out_specs=pl.BlockSpec((tm, h_p), row0),
        scratch_shapes=[pltpu.VMEM((tm, c_p), jnp.float32)],
        compiler_params=cparams,
    )(*l1_args)

    # --- kernel 2: layer 2 ----------------------------------------------------
    out_p = pl.pallas_call(
        gcn_layer2_kernel,
        out_shape=jax.ShapeDtypeStruct((n_p, h_p), jnp.float32),
        grid=grid,
        in_specs=[
            pl.BlockSpec((tm, tk), row_k),      # adj int8
            pl.BlockSpec((tk, h_p), k_row),     # z2 K-tile
            pl.BlockSpec((tm, 1), row0),        # dis for dst rows
            pl.BlockSpec((h_p, h_p), const),    # W2
            pl.BlockSpec((1, h_p), const),      # b2
        ],
        out_specs=pl.BlockSpec((tm, h_p), row0),
        scratch_shapes=[pltpu.VMEM((tm, h_p), jnp.float32)],
        compiler_params=cparams,
    )(a, z2, dis_col, w2_p, b2_p)

    return out_p[:n, :hidden]


def init_params(key, in_channels, hidden_channels):
    """Deterministic glorot-uniform weights, zero biases (GCNConv.reset_parameters)."""
    k1, k2 = jax.random.split(key)

    def glorot(k, shape):
        limit = (6.0 / (shape[0] + shape[1])) ** 0.5
        return jax.random.uniform(k, shape, jnp.float32, -limit, limit)

    w1 = glorot(k1, (in_channels, hidden_channels))
    b1 = jnp.zeros((hidden_channels,), jnp.float32)
    w2 = glorot(k2, (hidden_channels, hidden_channels))
    b2 = jnp.zeros((hidden_channels,), jnp.float32)
    return w1, b1, w2, b2


if __name__ == "__main__":
    N = 200           # num_nodes
    C_IN = 8          # in_channels
    HIDDEN = 32       # hidden_channels

    key = jax.random.PRNGKey(0)
    kx, kp, kd = jax.random.split(key, 3)

    # deterministic node features
    x = jax.random.normal(kx, (N, C_IN), jnp.float32)

    # deterministic edge list: bidirectional ring over N nodes -> (2, 2N)
    idx = jnp.arange(N, dtype=jnp.int32)
    src = jnp.concatenate([idx, (idx + 1) % N])
    dst = jnp.concatenate([(idx + 1) % N, idx])
    edge_index = jnp.stack([src, dst], axis=0)   # (2, 400)

    w1, b1, w2, b2 = init_params(kp, C_IN, HIDDEN)

    # Small tiles so this toy graph still exercises the (rows x K) accumulation
    # grid (2x2): pl.when init/epilogue, K-tiled adj stream, padded rows/cols.
    out = gcn_classifier_forward(x, edge_index, w1, b1, w2, b2,
                                 dropout_rng=kd, training=True,
                                 tile_rows=128, k_tile=128)
    jax.block_until_ready(out)
    assert out.shape == (N, HIDDEN) and out.dtype == jnp.float32
    assert bool(jnp.all(jnp.isfinite(out)))
    print("KERNEL_OK")
</pallas_src>

<mosaic_0001>
module attributes {stable_mosaic.version = 11 : i64} {
  func.func @gcn_layer1_train_kernel(%arg0: i32, %arg1: i32, %arg2: memref<128x128xi8, #tpu.memory_space<vmem>>, %arg3: memref<128x128xbf16, #tpu.memory_space<vmem>>, %arg4: memref<128x1xf32, #tpu.memory_space<vmem>>, %arg5: memref<128x128xf32, #tpu.memory_space<vmem>>, %arg6: memref<1x128xf32, #tpu.memory_space<vmem>>, %arg7: memref<128x128xbf16, #tpu.memory_space<vmem>>, %arg8: memref<128x128xbf16, #tpu.memory_space<vmem>>, %arg9: memref<128x128xf32, #tpu.memory_space<vmem>>) attributes {dimension_semantics = [#tpu.dimension_semantics<parallel>, #tpu.dimension_semantics<arbitrary>], iteration_bounds = array<i64: 2, 2>, scalar_prefetch = 0 : i64, scratch_operands = 1 : i64, tpu.core_type = #tpu.core_type<tc>, window_params = [{transform_indices = @transform_0, window_bounds = array<i64: 128, 128>}, {transform_indices = @transform_1, window_bounds = array<i64: 128, 128>}, {transform_indices = @transform_2, window_bounds = array<i64: 128, 1>}, {pipeline_mode = #tpu.pipeline_mode<synchronous>, transform_indices = @transform_3, window_bounds = array<i64: 128, 128>}, {pipeline_mode = #tpu.pipeline_mode<synchronous>, transform_indices = @transform_4, window_bounds = array<i64: 1, 128>}, {transform_indices = @transform_5, window_bounds = array<i64: 128, 128>}, {transform_indices = @transform_6, window_bounds = array<i64: 128, 128>}]} {
    %c0_i32 = arith.constant 0 : i32
    %0 = arith.cmpi eq, %arg1, %c0_i32 : i32
    %1 = arith.extui %0 : i1 to i32
    %c0_i32_0 = arith.constant 0 : i32
    %2 = arith.cmpi ne, %1, %c0_i32_0 : i32
    scf.if %2 {
      %cst_9 = arith.constant 0.000000e+00 : f32
      %13 = vector.broadcast %cst_9 : f32 to vector<128x128xf32>
      %c0_10 = arith.constant 0 : index
      %c0_11 = arith.constant 0 : index
      %14 = vector.load %arg9[%c0_10, %c0_11] : memref<128x128xf32, #tpu.memory_space<vmem>>, vector<128x128xf32>
      tpu.vector_store %arg9[%c0_10, %c0_11], %13 {strides = array<i32>} : memref<128x128xf32, #tpu.memory_space<vmem>>, vector<128x128xf32>,
    } else {
    }
    %c0 = arith.constant 0 : index
    %c0_1 = arith.constant 0 : index
    %3 = vector.load %arg9[%c0, %c0_1] : memref<128x128xf32, #tpu.memory_space<vmem>>, vector<128x128xf32>
    %c0_2 = arith.constant 0 : index
    %c0_3 = arith.constant 0 : index
    %4 = vector.load %arg2[%c0_2, %c0_3] : memref<128x128xi8, #tpu.memory_space<vmem>>, vector<128x128xi8>
    %5 = arith.sitofp %4 : vector<128x128xi8> to vector<128x128xbf16>
    %c0_4 = arith.constant 0 : index
    %c0_5 = arith.constant 0 : index
    %6 = vector.load %arg3[%c0_4, %c0_5] : memref<128x128xbf16, #tpu.memory_space<vmem>>, vector<128x128xbf16>
    %cst = arith.constant dense<0.000000e+00> : vector<128x128xf32>
    %7 = tpu.matmul %5, %6, %cst {dimension_numbers = #tpu.dot_dimension_numbers<[1], [0], [0], [1], [0, 0, 1, 1], [], []>} : vector<128x128xbf16>, vector<128x128xbf16>, vector<128x128xf32> -> vector<128x128xf32>
    %8 = arith.addf %3, %7 : vector<128x128xf32>
    %c0_6 = arith.constant 0 : index
    %c0_7 = arith.constant 0 : index
    %9 = vector.load %arg9[%c0_6, %c0_7] : memref<128x128xf32, #tpu.memory_space<vmem>>, vector<128x128xf32>
    tpu.vector_store %arg9[%c0_6, %c0_7], %8 {strides = array<i32>} : memref<128x128xf32, #tpu.memory_space<vmem>>, vector<128x128xf32>,
    %c1_i32 = arith.constant 1 : i32
    %10 = arith.cmpi eq, %arg1, %c1_i32 : i32
    %11 = arith.extui %10 : i1 to i32
    %c0_i32_8 = arith.constant 0 : i32
    %12 = arith.cmpi ne, %11, %c0_i32_8 : i32
    scf.if %12 {
      %c0_9 = arith.constant 0 : index
      %c0_10 = arith.constant 0 : index
      %13 = vector.load %arg9[%c0_9, %c0_10] : memref<128x128xf32, #tpu.memory_space<vmem>>, vector<128x128xf32>
      %c0_11 = arith.constant 0 : index
      %c0_12 = arith.constant 0 : index
      %14 = vector.load %arg4[%c0_11, %c0_12] : memref<128x1xf32, #tpu.memory_space<vmem>>, vector<128x1xf32>
      %15 = vector.broadcast %14 : vector<128x1xf32> to vector<128x128xf32>
      %16 = arith.mulf %13, %15 : vector<128x128xf32>
      %c0_13 = arith.constant 0 : index
      %c0_14 = arith.constant 0 : index
      %17 = vector.load %arg5[%c0_13, %c0_14] : memref<128x128xf32, #tpu.memory_space<vmem>>, vector<128x128xf32>
      %cst_15 = arith.constant dense<0.000000e+00> : vector<128x128xf32>
      %18 = tpu.matmul %16, %17, %cst_15 {dimension_numbers = #tpu.dot_dimension_numbers<[1], [0], [0], [1], [0, 0, 1, 1], [], []>} : vector<128x128xf32>, vector<128x128xf32>, vector<128x128xf32> -> vector<128x128xf32>
      %c0_16 = arith.constant 0 : index
      %c0_17 = arith.constant 0 : index
      %19 = vector.load %arg6[%c0_16, %c0_17] : memref<1x128xf32, #tpu.memory_space<vmem>>, vector<1x128xf32>
      %20 = vector.broadcast %19 : vector<1x128xf32> to vector<128x128xf32>
      %21 = arith.addf %18, %20 : vector<128x128xf32>
      %c0_18 = arith.constant 0 : index
      %c0_19 = arith.constant 0 : index
      %22 = vector.load %arg7[%c0_18, %c0_19] : memref<128x128xbf16, #tpu.memory_space<vmem>>, vector<128x128xbf16>
      %23 = arith.extf %22 : vector<128x128xbf16> to vector<128x128xf32>
      %24 = arith.mulf %21, %23 : vector<128x128xf32>
      %c0_20 = arith.constant 0 : index
      %c0_21 = arith.constant 0 : index
      %25 = vector.load %arg4[%c0_20, %c0_21] : memref<128x1xf32, #tpu.memory_space<vmem>>, vector<128x1xf32>
      %26 = vector.broadcast %25 : vector<128x1xf32> to vector<128x128xf32>
      %27 = arith.mulf %24, %26 : vector<128x128xf32>
      %28 = arith.truncf %27 : vector<128x128xf32> to vector<128x128xbf16>
      %c0_22 = arith.constant 0 : index
      %c0_23 = arith.constant 0 : index
      %29 = vector.load %arg8[%c0_22, %c0_23] : memref<128x128xbf16, #tpu.memory_space<vmem>>, vector<128x128xbf16>
      tpu.vector_store %arg8[%c0_22, %c0_23], %28 {strides = array<i32>} : memref<128x128xbf16, #tpu.memory_space<vmem>>, vector<128x128xbf16>,
    } else {
    }
    return
  }
  func.func @transform_0(%arg0: i32, %arg1: i32) -> (i32, i32) {
    %c0_i32 = arith.constant 0 : i32
    return %arg0, %arg1 : i32, i32
  }
  func.func @transform_1(%arg0: i32, %arg1: i32) -> (i32, i32) {
    %c0_i32 = arith.constant 0 : i32
    %c0_i32_0 = arith.constant 0 : i32
    return %arg1, %c0_i32 : i32, i32
  }
  func.func @transform_2(%arg0: i32, %arg1: i32) -> (i32, i32) {
    %c0_i32 = arith.constant 0 : i32
    %c0_i32_0 = arith.constant 0 : i32
    return %arg0, %c0_i32 : i32, i32
  }
  func.func @transform_3(%arg0: i32, %arg1: i32) -> (i32, i32) {
    %c0_i32 = arith.constant 0 : i32
    %c0_i32_0 = arith.constant 0 : i32
    %c0_i32_1 = arith.constant 0 : i32
    return %c0_i32, %c0_i32_0 : i32, i32
  }
  func.func @transform_4(%arg0: i32, %arg1: i32) -> (i32, i32) {
    %c0_i32 = arith.constant 0 : i32
    %c0_i32_0 = arith.constant 0 : i32
    %c0_i32_1 = arith.constant 0 : i32
    return %c0_i32, %c0_i32_0 : i32, i32
  }
  func.func @transform_5(%arg0: i32, %arg1: i32) -> (i32, i32) {
    %c0_i32 = arith.constant 0 : i32
    %c0_i32_0 = arith.constant 0 : i32
    return %arg0, %c0_i32 : i32, i32
  }
  func.func @transform_6(%arg0: i32, %arg1: i32) -> (i32, i32) {
    %c0_i32 = arith.constant 0 : i32
    %c0_i32_0 = arith.constant 0 : i32
    return %arg0, %c0_i32 : i32, i32
  }
}

</mosaic_0001>

<llo_original>
// kernel: tpu_custom_call.1
$region0: #{tpu_custom_call.1}
  #allocation0 [shape = 'u32[]', space=smem, size = 0x4, offset = 0x4, fixed_abs, tag = 'smem constant byte address 0x4 - core index']
  #allocation1 [shape = 'u32[144,128]{1,0:T(1,128)}', space=vmem, size = 0x12000, scoped, tag = 'internal scratch']
  #allocation2 [shape = 'f32[128,128]{1,0:T(8,128)}', space=vmem, size = 0x10000, scoped, tag = 'scratch operand']
  %s0 = inlined_call_operand.vmem [shape: s8[256,256], index: 0, kind: input, shape index: {}]
  %s1 = inlined_call_operand.vmem [shape: bf16[256,128], index: 1, kind: input, shape index: {}]
  %s2 = inlined_call_operand.vmem [shape: f32[256,1], index: 2, kind: input, shape index: {}]
  %s3 = inlined_call_operand.hbm [shape: f32[128,128], index: 3, kind: input, shape index: {}]
  %s4 = inlined_call_operand.vmem [shape: f32[1,128], index: 4, kind: input, shape index: {}]
  %s5 = inlined_call_operand.hbm [shape: bf16[256,128], index: 5, kind: input, shape index: {}]
  %s6 = inlined_call_operand.hbm [shape: bf16[256,128], index: 6, kind: output, shape index: {}]
  %s7 = sld [smem:[#allocation0]]
  $region111: #{tpu_custom_call.1} parent=0
    _
  %s9 = ssub.s32 1, %s7
  %s10 = scalar_select 0, %s9, %s7
  $region1: #{tpu_custom_call.1} parent=0
    #allocation3 [shape = 'u8[32768]{0}', space=vmem, size = 0x8000, scoped, tag = 'input window, operand 0']
    #allocation4 [shape = 'u8[65536]{0}', space=vmem, size = 0x10000, scoped, tag = 'input window, operand 3, single buffered']
    #allocation5 [shape = 's32[2]{0}', space=sflag, size = 0x8, scoped, tag = 'scoped memory for tpu_custom_call.1']
    #allocation6 [shape = 's32[2]{0}', space=sflag, size = 0x8, scoped, tag = 'scoped memory for tpu_custom_call.1']
    #allocation7 [shape = 'u8[65536]{0}', space=vmem, size = 0x10000, scoped, tag = 'input window, operand 5']
    #allocation8 [shape = 's32[2]{0}', space=sflag, size = 0x8, scoped, tag = 'scoped memory for tpu_custom_call.1']
    #allocation9 [shape = 'u8[65536]{0}', space=vmem, size = 0x10000, scoped, tag = 'output window, operand 0']
    %11 = vsyncpa [#allocation5], 0
    %12 = vsyncpa [#allocation8], 0
    %s13 = scalar_lea.sflag [#allocation8], 1
    %14 = vsyncpa %s13, 0
    %15 = vsyncpa [#allocation6], 0
    %s16 = scalar_lea.sflag [#allocation6], 1
    %17 = vsyncpa %s16, 0
    loop: start=0, step=1, limit=6
    $region2: #{tpu_custom_call.1} parent=1 // loop_pre_header
      _
    $region3: #{tpu_custom_call.1} parent=1 // loop_header
      %s19 = sphi 0, %s23
      %p20 = scmp.ge.s32.totalorder %s19, 6
      %s26 = sphi 0, %s38
      %s27 = sphi 0, %s34
      %s28 = sphi 0, %s26
      %s29 = sphi 0, %s27
      %s30 = sphi 0, %s28
      %s31 = sphi 0, %s29
      %s43 = sphi 0, %s45
      %s46 = sphi 0, %s43
      %s47 = sphi 0, %s46
      %s63 = sphi 0, %s47
      %s69 = sphi 0, %s71
      %s72 = sphi 0, %s69
      %s73 = sphi 0, %s72
      %s89 = sphi 0, %s73
      %s95 = sphi 0, %s97
      %s98 = sphi 0, %s95
      %s99 = sphi 0, %s98
      %s115 = sphi 0, %s99
      %s119 = sphi 0, %s119
      %s121 = sphi 0, %s119
      %s122 = sphi 0, %s121
      %s136 = sphi 0, %s122
      %s140 = sphi 0, %s140
      %s142 = sphi 0, %s140
      %s143 = sphi 0, %s142
      %s157 = sphi 0, %s143
      %s163 = sphi 0, %s165
      %s166 = sphi 0, %s163
      %s167 = sphi 0, %s166
      %s183 = sphi 0, %s167
      %s189 = sphi 0, %s191
      %s192 = sphi 0, %s189
      %s193 = sphi 0, %s192
      %s209 = sphi 0, %s193
    $region4: #{tpu_custom_call.1} parent=1 // loop_header_branch
      %22 = sbr.rel (%p20) target = $region8
    $region5: #{tpu_custom_call.1} parent=1 // loop_body
      %s24 = ssub.s32 %s19, 1
      %s25 = ssub.s32 %s19, 2
      %s32 = sadd.s32 1, %s27
      %p33 = scmp.ge.s32.totalorder %s32, 2
      %s34 = scalar_select %p33, 0, %s32
      %s35 = sadd.s32 1, %s26
      %s36 = scalar_select %p33, %s35, %s26
      %p37 = scmp.ge.s32.totalorder %s36, 2
      %s38 = scalar_select %p37, 0, %s36
      %s39 = ssub.s32 %s26, %s38
      %s40 = ssub.s32 %s27, %s34
      %s41 = sor.u32 %s39, %s40
      %p42 = scmp.eq.s32.totalorder %s41, 0
      %s44 = sadd.s32 %s43, 1
      %s45 = scalar_select %p42, %s43, %s44
      %p48 = pneg %p42
      %p49 = scmp.eq.s32.totalorder %s19, 3
      %p50 = por %p48, %p49
      %p51 = scmp.ne.s32.totalorder %s43, %s46
      %p52 = scmp.eq.s32.totalorder %s19, 0
      %p53 = por %p51, %p52
      %p54 = scmp.ne.s32.totalorder %s43, %s46
      %p55 = scmp.eq.s32.totalorder %s24, 3
      %p56 = por %p54, %p55
      %p57 = scmp.ne.s32.totalorder %s46, %s47
      %p58 = scmp.eq.s32.totalorder %s24, 0
      %p59 = por %p57, %p58
      %p60 = scmp.ne.s32.totalorder %s46, %s47
      %p61 = scmp.eq.s32.totalorder %s25, 3
      %p62 = por %p60, %p61
      %p64 = scmp.ne.s32.totalorder %s47, %s63
      %p65 = scmp.eq.s32.totalorder %s25, 0
      %p66 = por %p64, %p65
      %s67 = ssub.s32 %s27, %s34
      %p68 = scmp.eq.s32.totalorder %s67, 0
      %s70 = sadd.s32 %s69, 1
      %s71 = scalar_select %p68, %s69, %s70
      %p74 = pneg %p68
      %p75 = scmp.eq.s32.totalorder %s19, 3
      %p76 = por %p74, %p75
      %p77 = scmp.ne.s32.totalorder %s69, %s72
      %p78 = scmp.eq.s32.totalorder %s19, 0
      %p79 = por %p77, %p78
      %p80 = scmp.ne.s32.totalorder %s69, %s72
      %p81 = scmp.eq.s32.totalorder %s24, 3
      %p82 = por %p80, %p81
      %p83 = scmp.ne.s32.totalorder %s72, %s73
      %p84 = scmp.eq.s32.totalorder %s24, 0
      %p85 = por %p83, %p84
      %p86 = scmp.ne.s32.totalorder %s72, %s73
      %p87 = scmp.eq.s32.totalorder %s25, 3
      %p88 = por %p86, %p87
      %p90 = scmp.ne.s32.totalorder %s73, %s89
      %p91 = scmp.eq.s32.totalorder %s25, 0
      %p92 = por %p90, %p91
      %s93 = ssub.s32 %s26, %s38
      %p94 = scmp.eq.s32.totalorder %s93, 0
      %s96 = sadd.s32 %s95, 1
      %s97 = scalar_select %p94, %s95, %s96
      %p100 = pneg %p94
      %p101 = scmp.eq.s32.totalorder %s19, 3
      %p102 = por %p100, %p101
      %p103 = scmp.ne.s32.totalorder %s95, %s98
      %p104 = scmp.eq.s32.totalorder %s19, 0
      %p105 = por %p103, %p104
      %p106 = scmp.ne.s32.totalorder %s95, %s98
      %p107 = scmp.eq.s32.totalorder %s24, 3
      %p108 = por %p106, %p107
      %p109 = scmp.ne.s32.totalorder %s98, %s99
      %p110 = scmp.eq.s32.totalorder %s24, 0
      %p111 = por %p109, %p110
      %p112 = scmp.ne.s32.totalorder %s98, %s99
      %p113 = scmp.eq.s32.totalorder %s25, 3
      %p114 = por %p112, %p113
      %p116 = scmp.ne.s32.totalorder %s99, %s115
      %p117 = scmp.eq.s32.totalorder %s25, 0
      %p118 = por %p116, %p117
      %s120 = sadd.s32 %s119, 1
      %p123 = scmp.eq.s32.totalorder %s19, 3
      %p124 = scmp.ne.s32.totalorder %s119, %s121
      %p125 = scmp.eq.s32.totalorder %s19, 0
      %p126 = por %p124, %p125
      %p127 = scmp.ne.s32.totalorder %s119, %s121
      %p128 = scmp.eq.s32.totalorder %s24, 3
      %p129 = por %p127, %p128
      %p130 = scmp.ne.s32.totalorder %s121, %s122
      %p131 = scmp.eq.s32.totalorder %s24, 0
      %p132 = por %p130, %p131
      %p133 = scmp.ne.s32.totalorder %s121, %s122
      %p134 = scmp.eq.s32.totalorder %s25, 3
      %p135 = por %p133, %p134
      %p137 = scmp.ne.s32.totalorder %s122, %s136
      %p138 = scmp.eq.s32.totalorder %s25, 0
      %p139 = por %p137, %p138
      %s141 = sadd.s32 %s140, 1
      %p144 = scmp.eq.s32.totalorder %s19, 3
      %p145 = scmp.ne.s32.totalorder %s140, %s142
      %p146 = scmp.eq.s32.totalorder %s19, 0
      %p147 = por %p145, %p146
      %p148 = scmp.ne.s32.totalorder %s140, %s142
      %p149 = scmp.eq.s32.totalorder %s24, 3
      %p150 = por %p148, %p149
      %p151 = scmp.ne.s32.totalorder %s142, %s143
      %p152 = scmp.eq.s32.totalorder %s24, 0
      %p153 = por %p151, %p152
      %p154 = scmp.ne.s32.totalorder %s142, %s143
      %p155 = scmp.eq.s32.totalorder %s25, 3
      %p156 = por %p154, %p155
      %p158 = scmp.ne.s32.totalorder %s143, %s157
      %p159 = scmp.eq.s32.totalorder %s25, 0
      %p160 = por %p158, %p159
      %s161 = ssub.s32 %s26, %s38
      %p162 = scmp.eq.s32.totalorder %s161, 0
      %s164 = sadd.s32 %s163, 1
      %s165 = scalar_select %p162, %s163, %s164
      %p168 = pneg %p162
      %p169 = scmp.eq.s32.totalorder %s19, 3
      %p170 = por %p168, %p169
      %p171 = scmp.ne.s32.totalorder %s163, %s166
      %p172 = scmp.eq.s32.totalorder %s19, 0
      %p173 = por %p171, %p172
      %p174 = scmp.ne.s32.totalorder %s163, %s166
      %p175 = scmp.eq.s32.totalorder %s24, 3
      %p176 = por %p174, %p175
      %p177 = scmp.ne.s32.totalorder %s166, %s167
      %p178 = scmp.eq.s32.totalorder %s24, 0
      %p179 = por %p177, %p178
      %p180 = scmp.ne.s32.totalorder %s166, %s167
      %p181 = scmp.eq.s32.totalorder %s25, 3
      %p182 = por %p180, %p181
      %p184 = scmp.ne.s32.totalorder %s167, %s183
      %p185 = scmp.eq.s32.totalorder %s25, 0
      %p186 = por %p184, %p185
      %s187 = ssub.s32 %s26, %s38
      %p188 = scmp.eq.s32.totalorder %s187, 0
      %s190 = sadd.s32 %s189, 1
      %s191 = scalar_select %p188, %s189, %s190
      %p194 = pneg %p188
      %p195 = scmp.eq.s32.totalorder %s19, 3
      %p196 = por %p194, %p195
      %p197 = scmp.ne.s32.totalorder %s189, %s192
      %p198 = scmp.eq.s32.totalorder %s19, 0
      %p199 = por %p197, %p198
      %p200 = scmp.ne.s32.totalorder %s189, %s192
      %p201 = scmp.eq.s32.totalorder %s24, 3
      %p202 = por %p200, %p201
      %p203 = scmp.ne.s32.totalorder %s192, %s193
      %p204 = scmp.eq.s32.totalorder %s24, 0
      %p205 = por %p203, %p204
      %p206 = scmp.ne.s32.totalorder %s192, %s193
      %p207 = scmp.eq.s32.totalorder %s25, 3
      %p208 = por %p206, %p207
      %p210 = scmp.ne.s32.totalorder %s193, %s209
      %p211 = scmp.eq.s32.totalorder %s25, 0
      %p212 = por %p210, %p211
      %p213 = scmp.le.s32.totalorder 1, %s19
      %p214 = scmp.lt.s32.totalorder %s19, 5
      %p215 = pnand %p213, %p214
      %p216 = pneg %p215
      // Predicated region
      $region9: #{tpu_custom_call.1} parent=5 // pred_check
        _
      $region10: #{tpu_custom_call.1} parent=5 // pred_check_branch
        %218 = sbr.rel (%p215) target = $region12
      $region11: #{tpu_custom_call.1} parent=5 // pred_region
        %s219 = ssub.s32 %s19, 1
        // Predicated region
        $region13: #{tpu_custom_call.1} parent=11 // pred_check
          %p220 = pneg %p132
        $region14: #{tpu_custom_call.1} parent=11 // pred_check_branch
          %222 = sbr.rel (%p220) target = $region16
        $region15: #{tpu_custom_call.1} parent=11 // pred_region
          %s224 = ssub.s32 2048, 2048
          %225 = vsyncadd [#allocation5], %s224
          %s226 = sshll.u32 [#allocation4], 4
          %s227 = int_to_ptr.vmem [resolvable:$true] %s226
          %232 = dma.hbm_to_vmem [thread:$0]  %s3, 2048, %s227, [#allocation5], 128, 128, 8
        $region16: #{tpu_custom_call.1} parent=11 // pred_fallthru
          _
        // Predicated region
        $region17: #{tpu_custom_call.1} parent=11 // pred_check
          %p233 = pneg %p153
        $region18: #{tpu_custom_call.1} parent=11 // pred_check_branch
          %235 = sbr.rel (%p233) target = $region20
        $region19: #{tpu_custom_call.1} parent=11 // pred_region
          _
        $region20: #{tpu_custom_call.1} parent=11 // pred_fallthru
          _
      $region12: #{tpu_custom_call.1} parent=5 // pred_fallthru
        _
      %p236 = scmp.lt.s32.totalorder %s19, 4
      // Predicated region
      $region21: #{tpu_custom_call.1} parent=5 // pred_check
        %p237 = pneg %p236
      $region22: #{tpu_custom_call.1} parent=5 // pred_check_branch
        %239 = sbr.rel (%p237) target = $region24
      $region23: #{tpu_custom_call.1} parent=5 // pred_region
        // Predicated region
        $region25: #{tpu_custom_call.1} parent=23 // pred_check
          %p240 = pneg %p53
        $region26: #{tpu_custom_call.1} parent=23 // pred_check_branch
          %242 = sbr.rel (%p240) target = $region28
        $region27: #{tpu_custom_call.1} parent=23 // pred_region
          %s243 = sand.u32 %s43, 1
          %s244 = sand.u32 %s43, 1
          %s245 = smul.addr %s244, 32
          %s246 = scalar_lea.vmem [#allocation3], %s245
          %s247 = smul.u32 4, %s26
          %s248 = smul.addr %s247, 2
          %s249 = sadd.s32 %s27, %s248
          %s250 = smul.addr %s249, 8
          %s251 = scalar_lea.vmem %s0, %s250
          // Predicated region
          $region29: #{tpu_custom_call.1} parent=27 // pred_check
            _
          $region30: #{tpu_custom_call.1} parent=27 // pred_check_branch
            %253 = sbr.rel (0) target = $region32
          $region31: #{tpu_custom_call.1} parent=27 // pred_region
            // Predicated region
            $region33: #{tpu_custom_call.1} parent=31 // pred_check
              _
            $region34: #{tpu_custom_call.1} parent=31 // pred_check_branch
              %255 = sbr.rel (0) target = $region36
            $region35: #{tpu_custom_call.1} parent=31 // pred_region
              // Predicated region
              $region48: #{tpu_custom_call.1} parent=35 // pred_check
                _
              $region49: #{tpu_custom_call.1} parent=35 // pred_check_branch
                %277 = sbr.rel (0) target = $region51
              $region50: #{tpu_custom_call.1} parent=35 // pred_region
                loop: start=0, step=1, limit=1
                $region52: #{tpu_custom_call.1} parent=50 // loop_pre_header
                  _
                $region53: #{tpu_custom_call.1} parent=50 // loop_header
                  %s279 = sphi 0, %s283
                  %p280 = scmp.ge.s32.totalorder %s279, 1
                  %s284 = sphi %s251, %s251
                  %s285 = sphi %s246, %s246
                $region54: #{tpu_custom_call.1} parent=50 // loop_header_branch
                  %282 = sbr.rel (%p280) target = $region58
                $region55: #{tpu_custom_call.1} parent=50 // loop_body
                  %v286 = vld [vmem:[%s284] sm:$0xff]
                  %287 = vst [vmem:[%s285] sm:$0xff] %v286
                  %v288 = vld [vmem:[%s284 + $0x10] sm:$0xff]
                  %289 = vst [vmem:[%s285 + $0x8] sm:$0xff] %v288
                  %v290 = vld [vmem:[%s284 + $0x20] sm:$0xff]
                  %291 = vst [vmem:[%s285 + $0x10] sm:$0xff] %v290
                  %v292 = vld [vmem:[%s284 + $0x30] sm:$0xff]
                  %293 = vst [vmem:[%s285 + $0x18] sm:$0xff] %v292
                $region56: #{tpu_custom_call.1} parent=50 // loop_footer
                  %s283 = sadd.s32 1, %s279
                $region57: #{tpu_custom_call.1} parent=50 // loop_footer_branch
                  %278 = sbr.rel target = $region53
                $region58: #{tpu_custom_call.1} parent=50 // loop_exit
                  _
              $region51: #{tpu_custom_call.1} parent=35 // pred_fallthru
                _
              // Predicated region
              $region59: #{tpu_custom_call.1} parent=35 // pred_check
                _
              $region60: #{tpu_custom_call.1} parent=35 // pred_check_branch
                %295 = sbr.rel target = $region62
              $region61: #{tpu_custom_call.1} parent=35 // pred_region
                _
              $region62: #{tpu_custom_call.1} parent=35 // pred_fallthru
                _
            $region36: #{tpu_custom_call.1} parent=31 // pred_fallthru
              _
            // Predicated region
            $region37: #{tpu_custom_call.1} parent=31 // pred_check
              _
            $region38: #{tpu_custom_call.1} parent=31 // pred_check_branch
              %257 = sbr.rel target = $region40
            $region39: #{tpu_custom_call.1} parent=31 // pred_region
              %s259 = ssub.s32 256, 1
              loop: start=0, step=1, limit=1
              $region41: #{tpu_custom_call.1} parent=39 // loop_pre_header
                _
              $region42: #{tpu_custom_call.1} parent=39 // loop_header
                %s261 = sphi 0, %s265
                %p262 = scmp.ge.s32.totalorder %s261, 1
                %s266 = sphi %s251, %s251
                %s267 = sphi %s246, %s246
              $region43: #{tpu_custom_call.1} parent=39 // loop_header_branch
                %264 = sbr.rel (%p262) target = $region47
              $region44: #{tpu_custom_call.1} parent=39 // loop_body
                %v268 = vld [vmem:[%s266] sm:%s259]
                %269 = vst [vmem:[%s267] sm:%s259] %v268
                %v270 = vld [vmem:[%s266 + $0x10] sm:%s259]
                %271 = vst [vmem:[%s267 + $0x8] sm:%s259] %v270
                %v272 = vld [vmem:[%s266 + $0x20] sm:%s259]
                %273 = vst [vmem:[%s267 + $0x10] sm:%s259] %v272
                %v274 = vld [vmem:[%s266 + $0x30] sm:%s259]
                %275 = vst [vmem:[%s267 + $0x18] sm:%s259] %v274
              $region45: #{tpu_custom_call.1} parent=39 // loop_footer
                %s265 = sadd.s32 1, %s261
              $region46: #{tpu_custom_call.1} parent=39 // loop_footer_branch
                %260 = sbr.rel target = $region42
              $region47: #{tpu_custom_call.1} parent=39 // loop_exit
                _
            $region40: #{tpu_custom_call.1} parent=31 // pred_fallthru
              _
          $region32: #{tpu_custom_call.1} parent=27 // pred_fallthru
            _
          %296 = vnop
        $region28: #{tpu_custom_call.1} parent=23 // pred_fallthru
          _
        // Predicated region
        $region63: #{tpu_custom_call.1} parent=23 // pred_check
          %p297 = pneg %p79
        $region64: #{tpu_custom_call.1} parent=23 // pred_check_branch
          %299 = sbr.rel (%p297) target = $region66
        $region65: #{tpu_custom_call.1} parent=23 // pred_region
          %s300 = smul.u32 16, %s27
          %p301 = scmp.lt.s32.totalorder %s300, 31
          %s302 = scalar_select %p301, %s300, 31
          %s303 = smul.addr %s302, 4
          %s304 = scalar_lea.vmem %s1, %s303
          %s305 = smul.u32 16, %s27
        $region66: #{tpu_custom_call.1} parent=23 // pred_fallthru
          _
        // Predicated region
        $region67: #{tpu_custom_call.1} parent=23 // pred_check
          %p306 = pneg %p105
        $region68: #{tpu_custom_call.1} parent=23 // pred_check_branch
          %308 = sbr.rel (%p306) target = $region70
        $region69: #{tpu_custom_call.1} parent=23 // pred_region
          %s309 = smul.u32 16, %s26
          %p310 = scmp.lt.s32.totalorder %s309, 31
          %s311 = scalar_select %p310, %s309, 31
          %s312 = smul.addr %s311, 8
          %s313 = scalar_lea.vmem %s2, %s312
          %s314 = smul.u32 16, %s26
        $region70: #{tpu_custom_call.1} parent=23 // pred_fallthru
          _
        // Predicated region
        $region71: #{tpu_custom_call.1} parent=23 // pred_check
          %p315 = pneg %p173
        $region72: #{tpu_custom_call.1} parent=23 // pred_check_branch
          %317 = sbr.rel (%p315) target = $region74
        $region73: #{tpu_custom_call.1} parent=23 // pred_region
          %s318 = sand.u32 %s163, 1
          %s319 = scalar_lea.sflag [#allocation8], %s318
          %s320 = sand.u32 %s163, 1
          %s321 = smul.addr %s320, 64
          %s322 = scalar_lea.vmem [#allocation7], %s321
          %s323 = smul.u32 16, %s26
          %s325 = ssub.s32 1024, 1024
          %326 = vsyncadd %s319, %s325
          %s327 = smul.addr %s323, 64
          %s328 = scalar_lea.hbm %s5, %s327
          %s329 = sshll.u32 %s322, 4
          %s330 = int_to_ptr.vmem [resolvable:$true] %s329
          %335 = dma.hbm_to_vmem [thread:$0]  %s328, 1024, %s330, %s319, 64, 64, 4
        $region74: #{tpu_custom_call.1} parent=23 // pred_fallthru
          _
      $region24: #{tpu_custom_call.1} parent=5 // pred_fallthru
        _
      %p336 = scmp.le.s32.totalorder 1, %s19
      %p337 = scmp.lt.s32.totalorder %s19, 5
      %p338 = pnand %p336, %p337
      %p339 = pneg %p338
      // Predicated region
      $region75: #{tpu_custom_call.1} parent=5 // pred_check
        _
      $region76: #{tpu_custom_call.1} parent=5 // pred_check_branch
        %341 = sbr.rel (%p338) target = $region78
      $region77: #{tpu_custom_call.1} parent=5 // pred_region
        %s342 = ssub.s32 %s19, 1
        %s343 = sand.u32 %s46, 1
        %s344 = sand.u32 %s46, 1
        %s345 = smul.addr %s344, 32
        %s346 = scalar_lea.vmem [#allocation3], %s345
        // Predicated region
        $region79: #{tpu_custom_call.1} parent=77 // pred_check
          %p347 = pneg %p59
        $region80: #{tpu_custom_call.1} parent=77 // pred_check_branch
          %349 = sbr.rel (%p347) target = $region82
        $region81: #{tpu_custom_call.1} parent=77 // pred_region
          _
        $region82: #{tpu_custom_call.1} parent=77 // pred_fallthru
          _
        // Predicated region
        $region83: #{tpu_custom_call.1} parent=77 // pred_check
          %p350 = pneg %p132
        $region84: #{tpu_custom_call.1} parent=77 // pred_check_branch
          %352 = sbr.rel (%p350) target = $region86
        $region85: #{tpu_custom_call.1} parent=77 // pred_region
          %353 = dma.done [#allocation5], 2048
        $region86: #{tpu_custom_call.1} parent=77 // pred_fallthru
          _
        %s354 = sand.u32 %s166, 1
        %s355 = scalar_lea.sflag [#allocation8], %s354
        %s356 = sand.u32 %s166, 1
        %s357 = smul.addr %s356, 64
        %s358 = scalar_lea.vmem [#allocation7], %s357
        // Predicated region
        $region87: #{tpu_custom_call.1} parent=77 // pred_check
          %p359 = pneg %p179
        $region88: #{tpu_custom_call.1} parent=77 // pred_check_branch
          %361 = sbr.rel (%p359) target = $region90
        $region89: #{tpu_custom_call.1} parent=77 // pred_region
          %362 = dma.done %s355, 1024
        $region90: #{tpu_custom_call.1} parent=77 // pred_fallthru
          _
        %s363 = sand.u32 %s46, 1
        %s364 = sand.u32 %s46, 1
        %s365 = smul.addr %s364, 32
        %s366 = scalar_lea.vmem [#allocation3], %s365
        %p367 = pneg %p59
        %p368 = pneg %p56
        %s369 = smul.u32 16, %s29
        %p370 = scmp.lt.s32.totalorder %s369, 31
        %s371 = scalar_select %p370, %s369, 31
        %s372 = smul.addr %s371, 4
        %s373 = scalar_lea.vmem %s1, %s372
        %p374 = pneg %p85
        %p375 = pneg %p82
        %s376 = smul.u32 16, %s28
        %p377 = scmp.lt.s32.totalorder %s376, 31
        %s378 = scalar_select %p377, %s376, 31
        %s379 = smul.addr %s378, 8
        %s380 = scalar_lea.vmem %s2, %s379
        %p381 = pneg %p111
        %p382 = pneg %p108
        %p383 = pneg %p132
        %p384 = pneg %p129
        %p385 = pneg %p153
        %p386 = pneg %p150
        %s387 = sand.u32 %s166, 1
        %s388 = scalar_lea.sflag [#allocation8], %s387
        %s389 = sand.u32 %s166, 1
        %s390 = smul.addr %s389, 64
        %s391 = scalar_lea.vmem [#allocation7], %s390
        %p392 = pneg %p179
        %p393 = pneg %p176
        %p394 = pneg %p205
        %p395 = pneg %p202
        %s396 = sand.u32 %s192, 1
        %s397 = scalar_lea.sflag [#allocation6], %s396
        %s398 = sand.u32 %s192, 1
        %s399 = smul.addr %s398, 64
        %s400 = scalar_lea.vmem [#allocation9], %s399
        %s401 = smul.u32 4, %s28
        %s402 = smul.u32 16, %s29
        %p403 = scmp.lt.s32.totalorder %s402, 31
        %s404 = scalar_select %p403, %s402, 31
        %s405 = smul.addr %s404, 4
        %s406 = scalar_lea.vmem %s1, %s405
        %s407 = smul.u32 16, %s29
        %s408 = smul.u32 16, %s28
        %p409 = scmp.lt.s32.totalorder %s408, 31
        %s410 = scalar_select %p409, %s408, 31
        %s411 = smul.addr %s410, 8
        %s412 = scalar_lea.vmem %s2, %s411
        %s413 = smul.u32 16, %s28
        %s414 = smul.u32 16, %s28
        %s415 = smul.u32 16, %s28
        %p417 = scmp.eq.s32.totalorder %s29, 0
        // Predicated region
        $region91: #{tpu_custom_call.1} parent=77 // pred_check
          %p418 = pneg %p417
        $region92: #{tpu_custom_call.1} parent=77 // pred_check_branch
          %420 = sbr.rel (%p418) target = $region94
        $region93: #{tpu_custom_call.1} parent=77 // pred_region
          %421 = vst [vmem:[#allocation2] sm:$0xff] 0.0
          %422 = vst [vmem:[#allocation2 + $0x8] sm:$0xff] 0.0
          %423 = vst [vmem:[#allocation2 + $0x10] sm:$0xff] 0.0
          %424 = vst [vmem:[#allocation2 + $0x18] sm:$0xff] 0.0
          %425 = vst [vmem:[#allocation2 + $0x20] sm:$0xff] 0.0
          %426 = vst [vmem:[#allocation2 + $0x28] sm:$0xff] 0.0
          %427 = vst [vmem:[#allocation2 + $0x30] sm:$0xff] 0.0
          %428 = vst [vmem:[#allocation2 + $0x38] sm:$0xff] 0.0
          %429 = vst [vmem:[#allocation2 + $0x40] sm:$0xff] 0.0
          %430 = vst [vmem:[#allocation2 + $0x48] sm:$0xff] 0.0
          %431 = vst [vmem:[#allocation2 + $0x50] sm:$0xff] 0.0
          %432 = vst [vmem:[#allocation2 + $0x58] sm:$0xff] 0.0
          %433 = vst [vmem:[#allocation2 + $0x60] sm:$0xff] 0.0
          %434 = vst [vmem:[#allocation2 + $0x68] sm:$0xff] 0.0
          %435 = vst [vmem:[#allocation2 + $0x70] sm:$0xff] 0.0
          %436 = vst [vmem:[#allocation2 + $0x78] sm:$0xff] 0.0
        $region94: #{tpu_custom_call.1} parent=77 // pred_fallthru
          _
        %v437 = vld [vmem:[#allocation2] sm:$0xff]
        %v438 = vld [vmem:[#allocation2 + $0x8] sm:$0xff]
        %v439 = vld [vmem:[#allocation2 + $0x10] sm:$0xff]
        %v440 = vld [vmem:[#allocation2 + $0x18] sm:$0xff]
        %v441 = vld [vmem:[#allocation2 + $0x20] sm:$0xff]
        %v442 = vld [vmem:[#allocation2 + $0x28] sm:$0xff]
        %v443 = vld [vmem:[#allocation2 + $0x30] sm:$0xff]
        %v444 = vld [vmem:[#allocation2 + $0x38] sm:$0xff]
        %v445 = vld [vmem:[#allocation2 + $0x40] sm:$0xff]
        %v446 = vld [vmem:[#allocation2 + $0x48] sm:$0xff]
        %v447 = vld [vmem:[#allocation2 + $0x50] sm:$0xff]
        %v448 = vld [vmem:[#allocation2 + $0x58] sm:$0xff]
        %v449 = vld [vmem:[#allocation2 + $0x60] sm:$0xff]
        %v450 = vld [vmem:[#allocation2 + $0x68] sm:$0xff]
        %v451 = vld [vmem:[#allocation2 + $0x70] sm:$0xff]
        %v452 = vld [vmem:[#allocation2 + $0x78] sm:$0xff]
        %v453 = vld [vmem:[%s346] sm:$0xff]
        %v454 = vld [vmem:[%s346 + $0x8] sm:$0xff]
        %v455 = vld [vmem:[%s346 + $0x10] sm:$0xff]
        %v456 = vld [vmem:[%s346 + $0x18] sm:$0xff]
        %v457 = vunpack.c.l.s8.bf16 %v453
        %v458 = vunpack.c.h.s8.bf16 %v453
        %v459 = vunpack.c.l.s8.bf16 %v454
        %v460 = vunpack.c.h.s8.bf16 %v454
        %v461 = vunpack.c.l.s8.bf16 %v455
        %v462 = vunpack.c.h.s8.bf16 %v455
        %v463 = vunpack.c.l.s8.bf16 %v456
        %v464 = vunpack.c.h.s8.bf16 %v456
        %v465 = vld [vmem:[%s406] sm:$0xf]
        %v466 = vld [vmem:[%s406 + $0x4] sm:$0xf]
        %v467 = vld [vmem:[%s406 + $0x8] sm:$0xf]
        %v468 = vld [vmem:[%s406 + $0xc] sm:$0xf]
        %v469 = vld [vmem:[%s406 + $0x10] sm:$0xf]
        %v470 = vld [vmem:[%s406 + $0x14] sm:$0xf]
        %v471 = vld [vmem:[%s406 + $0x18] sm:$0xf]
        %v472 = vld [vmem:[%s406 + $0x1c] sm:$0xf]
        %v473 = vld [vmem:[%s406 + $0x20] sm:$0xf]
        %v474 = vld [vmem:[%s406 + $0x24] sm:$0xf]
        %v475 = vld [vmem:[%s406 + $0x28] sm:$0xf]
        %v476 = vld [vmem:[%s406 + $0x2c] sm:$0xf]
        %v477 = vld [vmem:[%s406 + $0x30] sm:$0xf]
        %v478 = vld [vmem:[%s406 + $0x34] sm:$0xf]
        %v479 = vld [vmem:[%s406 + $0x38] sm:$0xf]
        %v480 = vld [vmem:[%s406 + $0x3c] sm:$0xf]
        %v497 = vunpack.c.l.b16 %v465
        %v498 = vunpack.c.l.b16 %v466
        %v499 = vunpack.c.l.b16 %v467
        %v500 = vunpack.c.l.b16 %v468
        %v501 = vunpack.c.l.b16 %v469
        %v502 = vunpack.c.l.b16 %v470
        %v503 = vunpack.c.l.b16 %v471
        %v504 = vunpack.c.l.b16 %v472
        %v505 = vunpack.c.l.b16 %v473
        %v506 = vunpack.c.l.b16 %v474
        %v507 = vunpack.c.l.b16 %v475
        %v508 = vunpack.c.l.b16 %v476
        %v509 = vunpack.c.l.b16 %v477
        %v510 = vunpack.c.l.b16 %v478
        %v511 = vunpack.c.l.b16 %v479
        %v512 = vunpack.c.l.b16 %v480
        %v513 = vpack.c.b16 %v498, %v497
        %v514 = vpack.c.b16 %v500, %v499
        %v515 = vpack.c.b16 %v502, %v501
        %v516 = vpack.c.b16 %v504, %v503
        %v517 = vpack.c.b16 %v506, %v505
        %v518 = vpack.c.b16 %v508, %v507
        %v519 = vpack.c.b16 %v510, %v509
        %v520 = vpack.c.b16 %v512, %v511
        %529 = vmatprep.subr.bf16.mxu0 0
        %530 = vmatpush1.bf16.msra.mxu0 %v520
        %531 = vmatprep.subr.bf16.mxu0 0
        %532 = vmatpush1.bf16.msra.mxu0 %v519
        %533 = vmatprep.subr.bf16.mxu0 0
        %534 = vmatpush1.bf16.msra.mxu0 %v518
        %535 = vmatprep.subr.bf16.mxu0 0
        %536 = vmatpush1.bf16.msra.mxu0 %v517
        %537 = vmatprep.subr.bf16.mxu0 0
        %538 = vmatpush1.bf16.msra.mxu0 %v516
        %539 = vmatprep.subr.bf16.mxu0 0
        %540 = vmatpush1.bf16.msra.mxu0 %v515
        %541 = vmatprep.subr.bf16.mxu0 0
        %542 = vmatpush1.bf16.msra.mxu0 %v514
        %543 = vmatprep.subr.bf16.mxu0 0
        %544 = vmatpush1.bf16.msra.mxu0 %v513
        %545 = vmatprep.subr.bf16.mxu0 0
        %546 = vmatpush2.bf16.msra.mxu0 0
        %547 = vmatprep.subr.bf16.mxu0 0
        %548 = vmatpush2.bf16.msra.mxu0 0
        %549 = vmatprep.subr.bf16.mxu0 0
        %550 = vmatpush2.bf16.msra.mxu0 0
        %551 = vmatprep.subr.bf16.mxu0 0
        %552 = vmatpush2.bf16.msra.mxu0 0
        %553 = vmatprep.subr.bf16.mxu0 0
        %554 = vmatpush2.bf16.msra.mxu0 0
        %555 = vmatprep.subr.bf16.mxu0 0
        %556 = vmatpush2.bf16.msra.mxu0 0
        %557 = vmatprep.subr.bf16.mxu0 0
        %558 = vmatpush2.bf16.msra.mxu0 0
        %559 = vmatprep.subr.bf16.mxu0 0
        %560 = vmatpush2.bf16.msra.mxu0 0
        %561 = vmatprep.mubr.bf16.mxu0 0
        %562 = vmatmul.mubr.bf16.gmra.mxu0 %v457
        %v563 = vpop.f32.mrf.mxu0
        %v564 = vadd.f32 0.0, %v563
        %v565 = vpop.f32.mrf.mxu0
        %v566 = vpop.f32.mrf.mxu0
        %v567 = vadd.f32 0.0, %v566
        %v568 = vpop.f32.mrf.mxu0
        %569 = vmatprep.mubr.bf16.mxu0 0
        %570 = vmatmul.mubr.bf16.gmra.mxu0 %v458
        %v571 = vpop.f32.mrf.mxu0
        %v572 = vadd.f32 0.0, %v571
        %v573 = vpop.f32.mrf.mxu0
        %v574 = vpop.f32.mrf.mxu0
        %v575 = vadd.f32 0.0, %v574
        %v576 = vpop.f32.mrf.mxu0
        %577 = vmatprep.mubr.bf16.mxu0 0
        %578 = vmatmul.mubr.bf16.gmra.mxu0 %v459
        %v579 = vpop.f32.mrf.mxu0
        %v580 = vadd.f32 0.0, %v579
        %v581 = vpop.f32.mrf.mxu0
        %v582 = vpop.f32.mrf.mxu0
        %v583 = vadd.f32 0.0, %v582
        %v584 = vpop.f32.mrf.mxu0
        %585 = vmatprep.mubr.bf16.mxu0 0
        %586 = vmatmul.mubr.bf16.gmra.mxu0 %v460
        %v587 = vpop.f32.mrf.mxu0
        %v588 = vadd.f32 0.0, %v587
        %v589 = vpop.f32.mrf.mxu0
        %v590 = vpop.f32.mrf.mxu0
        %v591 = vadd.f32 0.0, %v590
        %v592 = vpop.f32.mrf.mxu0
        %593 = vmatprep.mubr.bf16.mxu0 0
        %594 = vmatmul.mubr.bf16.gmra.mxu0 %v461
        %v595 = vpop.f32.mrf.mxu0
        %v596 = vadd.f32 0.0, %v595
        %v597 = vpop.f32.mrf.mxu0
        %v598 = vpop.f32.mrf.mxu0
        %v599 = vadd.f32 0.0, %v598
        %v600 = vpop.f32.mrf.mxu0
        %601 = vmatprep.mubr.bf16.mxu0 0
        %602 = vmatmul.mubr.bf16.gmra.mxu0 %v462
        %v603 = vpop.f32.mrf.mxu0
        %v604 = vadd.f32 0.0, %v603
        %v605 = vpop.f32.mrf.mxu0
        %v606 = vpop.f32.mrf.mxu0
        %v607 = vadd.f32 0.0, %v606
        %v608 = vpop.f32.mrf.mxu0
        %609 = vmatprep.mubr.bf16.mxu0 0
        %610 = vmatmul.mubr.bf16.gmra.mxu0 %v463
        %v611 = vpop.f32.mrf.mxu0
        %v612 = vadd.f32 0.0, %v611
        %v613 = vpop.f32.mrf.mxu0
        %v614 = vpop.f32.mrf.mxu0
        %v615 = vadd.f32 0.0, %v614
        %v616 = vpop.f32.mrf.mxu0
        %617 = vmatprep.mubr.bf16.mxu0 0
        %618 = vmatmul.mubr.bf16.gmra.mxu0 %v464
        %v619 = vpop.f32.mrf.mxu0
        %v620 = vadd.f32 0.0, %v619
        %v621 = vpop.f32.mrf.mxu0
        %v622 = vpop.f32.mrf.mxu0
        %v623 = vadd.f32 0.0, %v622
        %v624 = vpop.f32.mrf.mxu0
        %625 = vdwg.mxu0
        %v626 = vadd.f32 %v437, %v564
        %v627 = vadd.f32 %v438, %v567
        %v628 = vadd.f32 %v439, %v572
        %v629 = vadd.f32 %v440, %v575
        %v630 = vadd.f32 %v441, %v580
        %v631 = vadd.f32 %v442, %v583
        %v632 = vadd.f32 %v443, %v588
        %v633 = vadd.f32 %v444, %v591
        %v634 = vadd.f32 %v445, %v596
        %v635 = vadd.f32 %v446, %v599
        %v636 = vadd.f32 %v447, %v604
        %v637 = vadd.f32 %v448, %v607
        %v638 = vadd.f32 %v449, %v612
        %v639 = vadd.f32 %v450, %v615
        %v640 = vadd.f32 %v451, %v620
        %v641 = vadd.f32 %v452, %v623
        %642 = vst [vmem:[#allocation2] sm:$0xff] %v626
        %643 = vst [vmem:[#allocation2 + $0x8] sm:$0xff] %v627
        %644 = vst [vmem:[#allocation2 + $0x10] sm:$0xff] %v628
        %645 = vst [vmem:[#allocation2 + $0x18] sm:$0xff] %v629
        %646 = vst [vmem:[#allocation2 + $0x20] sm:$0xff] %v630
        %647 = vst [vmem:[#allocation2 + $0x28] sm:$0xff] %v631
        %648 = vst [vmem:[#allocation2 + $0x30] sm:$0xff] %v632
        %649 = vst [vmem:[#allocation2 + $0x38] sm:$0xff] %v633
        %650 = vst [vmem:[#allocation2 + $0x40] sm:$0xff] %v634
        %651 = vst [vmem:[#allocation2 + $0x48] sm:$0xff] %v635
        %652 = vst [vmem:[#allocation2 + $0x50] sm:$0xff] %v636
        %653 = vst [vmem:[#allocation2 + $0x58] sm:$0xff] %v637
        %654 = vst [vmem:[#allocation2 + $0x60] sm:$0xff] %v638
        %655 = vst [vmem:[#allocation2 + $0x68] sm:$0xff] %v639
        %656 = vst [vmem:[#allocation2 + $0x70] sm:$0xff] %v640
        %657 = vst [vmem:[#allocation2 + $0x78] sm:$0xff] %v641
        %p658 = scmp.eq.s32.totalorder %s29, 1
        // Predicated region
        $region95: #{tpu_custom_call.1} parent=77 // pred_check
          %p659 = pneg %p658
        $region96: #{tpu_custom_call.1} parent=77 // pred_check_branch
          %661 = sbr.rel (%p659) target = $region98
        $region97: #{tpu_custom_call.1} parent=77 // pred_region
          %v662 = vld [vmem:[#allocation2] sm:$0xff]
          %v663 = vld [vmem:[#allocation2 + $0x8] sm:$0xff]
          %v664 = vld [vmem:[#allocation2 + $0x10] sm:$0xff]
          %v665 = vld [vmem:[#allocation2 + $0x18] sm:$0xff]
          %v666 = vld [vmem:[#allocation2 + $0x20] sm:$0xff]
          %v667 = vld [vmem:[#allocation2 + $0x28] sm:$0xff]
          %v668 = vld [vmem:[#allocation2 + $0x30] sm:$0xff]
          %v669 = vld [vmem:[#allocation2 + $0x38] sm:$0xff]
          %v670 = vld [vmem:[#allocation2 + $0x40] sm:$0xff]
          %v671 = vld [vmem:[#allocation2 + $0x48] sm:$0xff]
          %v672 = vld [vmem:[#allocation2 + $0x50] sm:$0xff]
          %v673 = vld [vmem:[#allocation2 + $0x58] sm:$0xff]
          %v674 = vld [vmem:[#allocation2 + $0x60] sm:$0xff]
          %v675 = vld [vmem:[#allocation2 + $0x68] sm:$0xff]
          %v676 = vld [vmem:[#allocation2 + $0x70] sm:$0xff]
          %v677 = vld [vmem:[#allocation2 + $0x78] sm:$0xff]
          %v678 = vld [vmem:[%s412] sm:$0xff]
          %v679 = vld [vmem:[%s412 + $0x8] sm:$0xff]
          %v680 = vld [vmem:[%s412 + $0x10] sm:$0xff]
          %v681 = vld [vmem:[%s412 + $0x18] sm:$0xff]
          %v682 = vld [vmem:[%s412 + $0x20] sm:$0xff]
          %v683 = vld [vmem:[%s412 + $0x28] sm:$0xff]
          %v684 = vld [vmem:[%s412 + $0x30] sm:$0xff]
          %v685 = vld [vmem:[%s412 + $0x38] sm:$0xff]
          %v686 = vld [vmem:[%s412 + $0x40] sm:$0xff]
          %v687 = vld [vmem:[%s412 + $0x48] sm:$0xff]
          %v688 = vld [vmem:[%s412 + $0x50] sm:$0xff]
          %v689 = vld [vmem:[%s412 + $0x58] sm:$0xff]
          %v690 = vld [vmem:[%s412 + $0x60] sm:$0xff]
          %v691 = vld [vmem:[%s412 + $0x68] sm:$0xff]
          %v692 = vld [vmem:[%s412 + $0x70] sm:$0xff]
          %v693 = vld [vmem:[%s412 + $0x78] sm:$0xff]
          %695 = vset.pattern.permute.xlu0 0
          %696 = vperm.xlu0 %695, %v678
          %v697 = vpop.permute.xlu0 %696
          %700 = vset.pattern.permute.xlu0 0
          %701 = vperm.xlu0 %700, %v679
          %v702 = vpop.permute.xlu0 %701
          %705 = vset.pattern.permute.xlu0 0
          %706 = vperm.xlu0 %705, %v680
          %v707 = vpop.permute.xlu0 %706
          %710 = vset.pattern.permute.xlu0 0
          %711 = vperm.xlu0 %710, %v681
          %v712 = vpop.permute.xlu0 %711
          %715 = vset.pattern.permute.xlu0 0
          %716 = vperm.xlu0 %715, %v682
          %v717 = vpop.permute.xlu0 %716
          %720 = vset.pattern.permute.xlu0 0
          %721 = vperm.xlu0 %720, %v683
          %v722 = vpop.permute.xlu0 %721
          %725 = vset.pattern.permute.xlu0 0
          %726 = vperm.xlu0 %725, %v684
          %v727 = vpop.permute.xlu0 %726
          %730 = vset.pattern.permute.xlu0 0
          %731 = vperm.xlu0 %730, %v685
          %v732 = vpop.permute.xlu0 %731
          %735 = vset.pattern.permute.xlu0 0
          %736 = vperm.xlu0 %735, %v686
          %v737 = vpop.permute.xlu0 %736
          %740 = vset.pattern.permute.xlu0 0
          %741 = vperm.xlu0 %740, %v687
          %v742 = vpop.permute.xlu0 %741
          %745 = vset.pattern.permute.xlu0 0
          %746 = vperm.xlu0 %745, %v688
          %v747 = vpop.permute.xlu0 %746
          %750 = vset.pattern.permute.xlu0 0
          %751 = vperm.xlu0 %750, %v689
          %v752 = vpop.permute.xlu0 %751
          %755 = vset.pattern.permute.xlu0 0
          %756 = vperm.xlu0 %755, %v690
          %v757 = vpop.permute.xlu0 %756
          %760 = vset.pattern.permute.xlu0 0
          %761 = vperm.xlu0 %760, %v691
          %v762 = vpop.permute.xlu0 %761
          %765 = vset.pattern.permute.xlu0 0
          %766 = vperm.xlu0 %765, %v692
          %v767 = vpop.permute.xlu0 %766
          %770 = vset.pattern.permute.xlu0 0
          %771 = vperm.xlu0 %770, %v693
          %v772 = vpop.permute.xlu0 %771
          %v774 = vmul.f32 %v662, %v697
          %v775 = vmul.f32 %v663, %v702
          %v776 = vmul.f32 %v664, %v707
          %v777 = vmul.f32 %v665, %v712
          %v778 = vmul.f32 %v666, %v717
          %v779 = vmul.f32 %v667, %v722
          %v780 = vmul.f32 %v668, %v727
          %v781 = vmul.f32 %v669, %v732
          %v782 = vmul.f32 %v670, %v737
          %v783 = vmul.f32 %v671, %v742
          %v784 = vmul.f32 %v672, %v747
          %v785 = vmul.f32 %v673, %v752
          %v786 = vmul.f32 %v674, %v757
          %v787 = vmul.f32 %v675, %v762
          %v788 = vmul.f32 %v676, %v767
          %v789 = vmul.f32 %v677, %v772
          %v790 = vld [vmem:[#allocation4] sm:$0xff]
          %v791 = vld [vmem:[#allocation4 + $0x8] sm:$0xff]
          %v792 = vld [vmem:[#allocation4 + $0x10] sm:$0xff]
          %v793 = vld [vmem:[#allocation4 + $0x18] sm:$0xff]
          %v794 = vld [vmem:[#allocation4 + $0x20] sm:$0xff]
          %v795 = vld [vmem:[#allocation4 + $0x28] sm:$0xff]
          %v796 = vld [vmem:[#allocation4 + $0x30] sm:$0xff]
          %v797 = vld [vmem:[#allocation4 + $0x38] sm:$0xff]
          %v798 = vld [vmem:[#allocation4 + $0x40] sm:$0xff]
          %v799 = vld [vmem:[#allocation4 + $0x48] sm:$0xff]
          %v800 = vld [vmem:[#allocation4 + $0x50] sm:$0xff]
          %v801 = vld [vmem:[#allocation4 + $0x58] sm:$0xff]
          %v802 = vld [vmem:[#allocation4 + $0x60] sm:$0xff]
          %v803 = vld [vmem:[#allocation4 + $0x68] sm:$0xff]
          %v804 = vld [vmem:[#allocation4 + $0x70] sm:$0xff]
          %v805 = vld [vmem:[#allocation4 + $0x78] sm:$0xff]
          %v806 = vld [vmem:[%s4] sm:$0x1]
          %v808 = vlaneseq
          %v809 = vshrl.u32 %v808, 7
          %v810 = vsub.s32 0, %v809
          %v811 = vrot.slane %v806, %v810
          %813 = vmatprep.subr.mxu0 0.0
          %814 = vmatpush1.msra.mxu0 %v805
          %815 = vmatprep.subr.mxu0 0.0
          %816 = vmatpush1.msra.mxu0 %v804
          %817 = vmatprep.subr.mxu0 0.0
          %818 = vmatpush1.msra.mxu0 %v803
          %819 = vmatprep.subr.mxu0 0.0
          %820 = vmatpush1.msra.mxu0 %v802
          %821 = vmatprep.subr.mxu0 0.0
          %822 = vmatpush1.msra.mxu0 %v801
          %823 = vmatprep.subr.mxu0 0.0
          %824 = vmatpush1.msra.mxu0 %v800
          %825 = vmatprep.subr.mxu0 0.0
          %826 = vmatpush1.msra.mxu0 %v799
          %827 = vmatprep.subr.mxu0 0.0
          %828 = vmatpush1.msra.mxu0 %v798
          %829 = vmatprep.subr.mxu0 0.0
          %830 = vmatpush1.msra.mxu0 %v797
          %831 = vmatprep.subr.mxu0 0.0
          %832 = vmatpush1.msra.mxu0 %v796
          %833 = vmatprep.subr.mxu0 0.0
          %834 = vmatpush1.msra.mxu0 %v795
          %835 = vmatprep.subr.mxu0 0.0
          %836 = vmatpush1.msra.mxu0 %v794
          %837 = vmatprep.subr.mxu0 0.0
          %838 = vmatpush1.msra.mxu0 %v793
          %839 = vmatprep.subr.mxu0 0.0
          %840 = vmatpush1.msra.mxu0 %v792
          %841 = vmatprep.subr.mxu0 0.0
          %842 = vmatpush1.msra.mxu0 %v791
          %843 = vmatprep.subr.mxu0 0.0
          %844 = vmatpush1.msra.mxu0 %v790
          %845 = vmatprep.subr.mxu0 0.0
          %846 = vmatpush2.msra.mxu0 0.0
          %847 = vmatprep.subr.mxu0 0.0
          %848 = vmatpush2.msra.mxu0 0.0
          %849 = vmatprep.subr.mxu0 0.0
          %850 = vmatpush2.msra.mxu0 0.0
          %851 = vmatprep.subr.mxu0 0.0
          %852 = vmatpush2.msra.mxu0 0.0
          %853 = vmatprep.subr.mxu0 0.0
          %854 = vmatpush2.msra.mxu0 0.0
          %855 = vmatprep.subr.mxu0 0.0
          %856 = vmatpush2.msra.mxu0 0.0
          %857 = vmatprep.subr.mxu0 0.0
          %858 = vmatpush2.msra.mxu0 0.0
          %859 = vmatprep.subr.mxu0 0.0
          %860 = vmatpush2.msra.mxu0 0.0
          %861 = vmatprep.subr.mxu0 0.0
          %862 = vmatpush2.msra.mxu0 0.0
          %863 = vmatprep.subr.mxu0 0.0
          %864 = vmatpush2.msra.mxu0 0.0
          %865 = vmatprep.subr.mxu0 0.0
          %866 = vmatpush2.msra.mxu0 0.0
          %867 = vmatprep.subr.mxu0 0.0
          %868 = vmatpush2.msra.mxu0 0.0
          %869 = vmatprep.subr.mxu0 0.0
          %870 = vmatpush2.msra.mxu0 0.0
          %871 = vmatprep.subr.mxu0 0.0
          %872 = vmatpush2.msra.mxu0 0.0
          %873 = vmatprep.subr.mxu0 0.0
          %874 = vmatpush2.msra.mxu0 0.0
          %875 = vmatprep.subr.mxu0 0.0
          %876 = vmatpush2.msra.mxu0 0.0
          %877 = vmatprep.mubr.f32.mxu0 0.0
          %878 = vmatmul.mubr.f32.gmra.mxu0 %v774
          %v879 = vpop.f32.mrf.mxu0
          %v880 = vadd.f32 %v811, %v879
          %v881 = vpop.f32.mrf.mxu0
          %882 = vmatprep.mubr.f32.mxu0 0.0
          %883 = vmatmul.mubr.f32.gmra.mxu0 %v775
          %v884 = vpop.f32.mrf.mxu0
          %v885 = vadd.f32 %v811, %v884
          %v886 = vpop.f32.mrf.mxu0
          %887 = vmatprep.mubr.f32.mxu0 0.0
          %888 = vmatmul.mubr.f32.gmra.mxu0 %v776
          %v889 = vpop.f32.mrf.mxu0
          %v890 = vadd.f32 %v811, %v889
          %v891 = vpop.f32.mrf.mxu0
          %892 = vmatprep.mubr.f32.mxu0 0.0
          %893 = vmatmul.mubr.f32.gmra.mxu0 %v777
          %v894 = vpop.f32.mrf.mxu0
          %v895 = vadd.f32 %v811, %v894
          %v896 = vpop.f32.mrf.mxu0
          %897 = vmatprep.mubr.f32.mxu0 0.0
          %898 = vmatmul.mubr.f32.gmra.mxu0 %v778
          %v899 = vpop.f32.mrf.mxu0
          %v900 = vadd.f32 %v811, %v899
          %v901 = vpop.f32.mrf.mxu0
          %902 = vmatprep.mubr.f32.mxu0 0.0
          %903 = vmatmul.mubr.f32.gmra.mxu0 %v779
          %v904 = vpop.f32.mrf.mxu0
          %v905 = vadd.f32 %v811, %v904
          %v906 = vpop.f32.mrf.mxu0
          %907 = vmatprep.mubr.f32.mxu0 0.0
          %908 = vmatmul.mubr.f32.gmra.mxu0 %v780
          %v909 = vpop.f32.mrf.mxu0
          %v910 = vadd.f32 %v811, %v909
          %v911 = vpop.f32.mrf.mxu0
          %912 = vmatprep.mubr.f32.mxu0 0.0
          %913 = vmatmul.mubr.f32.gmra.mxu0 %v781
          %v914 = vpop.f32.mrf.mxu0
          %v915 = vadd.f32 %v811, %v914
          %v916 = vpop.f32.mrf.mxu0
          %917 = vmatprep.mubr.f32.mxu0 0.0
          %918 = vmatmul.mubr.f32.gmra.mxu0 %v782
          %v919 = vpop.f32.mrf.mxu0
          %v920 = vadd.f32 %v811, %v919
          %v921 = vpop.f32.mrf.mxu0
          %922 = vmatprep.mubr.f32.mxu0 0.0
          %923 = vmatmul.mubr.f32.gmra.mxu0 %v783
          %v924 = vpop.f32.mrf.mxu0
          %v925 = vadd.f32 %v811, %v924
          %v926 = vpop.f32.mrf.mxu0
          %927 = vmatprep.mubr.f32.mxu0 0.0
          %928 = vmatmul.mubr.f32.gmra.mxu0 %v784
          %v929 = vpop.f32.mrf.mxu0
          %v930 = vadd.f32 %v811, %v929
          %v931 = vpop.f32.mrf.mxu0
          %932 = vmatprep.mubr.f32.mxu0 0.0
          %933 = vmatmul.mubr.f32.gmra.mxu0 %v785
          %v934 = vpop.f32.mrf.mxu0
          %v935 = vadd.f32 %v811, %v934
          %v936 = vpop.f32.mrf.mxu0
          %937 = vmatprep.mubr.f32.mxu0 0.0
          %938 = vmatmul.mubr.f32.gmra.mxu0 %v786
          %v939 = vpop.f32.mrf.mxu0
          %v940 = vadd.f32 %v811, %v939
          %v941 = vpop.f32.mrf.mxu0
          %942 = vmatprep.mubr.f32.mxu0 0.0
          %943 = vmatmul.mubr.f32.gmra.mxu0 %v787
          %v944 = vpop.f32.mrf.mxu0
          %v945 = vadd.f32 %v811, %v944
          %v946 = vpop.f32.mrf.mxu0
          %947 = vmatprep.mubr.f32.mxu0 0.0
          %948 = vmatmul.mubr.f32.gmra.mxu0 %v788
          %v949 = vpop.f32.mrf.mxu0
          %v950 = vadd.f32 %v811, %v949
          %v951 = vpop.f32.mrf.mxu0
          %952 = vmatprep.mubr.f32.mxu0 0.0
          %953 = vmatmul.mubr.f32.gmra.mxu0 %v789
          %v954 = vpop.f32.mrf.mxu0
          %v955 = vadd.f32 %v811, %v954
          %v956 = vpop.f32.mrf.mxu0
          %957 = vdwg.mxu0
          %v958 = vld [vmem:[%s358] sm:$0xf]
          %v959 = vld [vmem:[%s358 + $0x4] sm:$0xf]
          %v960 = vld [vmem:[%s358 + $0x8] sm:$0xf]
          %v961 = vld [vmem:[%s358 + $0xc] sm:$0xf]
          %v962 = vld [vmem:[%s358 + $0x10] sm:$0xf]
          %v963 = vld [vmem:[%s358 + $0x14] sm:$0xf]
          %v964 = vld [vmem:[%s358 + $0x18] sm:$0xf]
          %v965 = vld [vmem:[%s358 + $0x1c] sm:$0xf]
          %v966 = vld [vmem:[%s358 + $0x20] sm:$0xf]
          %v967 = vld [vmem:[%s358 + $0x24] sm:$0xf]
          %v968 = vld [vmem:[%s358 + $0x28] sm:$0xf]
          %v969 = vld [vmem:[%s358 + $0x2c] sm:$0xf]
          %v970 = vld [vmem:[%s358 + $0x30] sm:$0xf]
          %v971 = vld [vmem:[%s358 + $0x34] sm:$0xf]
          %v972 = vld [vmem:[%s358 + $0x38] sm:$0xf]
          %v973 = vld [vmem:[%s358 + $0x3c] sm:$0xf]
          %v974 = vunpack.c.l.bf16 %v958
          %v975 = vunpack.c.l.bf16 %v959
          %v976 = vunpack.c.l.bf16 %v960
          %v977 = vunpack.c.l.bf16 %v961
          %v978 = vunpack.c.l.bf16 %v962
          %v979 = vunpack.c.l.bf16 %v963
          %v980 = vunpack.c.l.bf16 %v964
          %v981 = vunpack.c.l.bf16 %v965
          %v982 = vunpack.c.l.bf16 %v966
          %v983 = vunpack.c.l.bf16 %v967
          %v984 = vunpack.c.l.bf16 %v968
          %v985 = vunpack.c.l.bf16 %v969
          %v986 = vunpack.c.l.bf16 %v970
          %v987 = vunpack.c.l.bf16 %v971
          %v988 = vunpack.c.l.bf16 %v972
          %v989 = vunpack.c.l.bf16 %v973
          %v990 = vmul.f32 %v880, %v974
          %v991 = vmul.f32 %v885, %v975
          %v992 = vmul.f32 %v890, %v976
          %v993 = vmul.f32 %v895, %v977
          %v994 = vmul.f32 %v900, %v978
          %v995 = vmul.f32 %v905, %v979
          %v996 = vmul.f32 %v910, %v980
          %v997 = vmul.f32 %v915, %v981
          %v998 = vmul.f32 %v920, %v982
          %v999 = vmul.f32 %v925, %v983
          %v1000 = vmul.f32 %v930, %v984
          %v1001 = vmul.f32 %v935, %v985
          %v1002 = vmul.f32 %v940, %v986
          %v1003 = vmul.f32 %v945, %v987
          %v1004 = vmul.f32 %v950, %v988
          %v1005 = vmul.f32 %v955, %v989
          %v1006 = vmul.f32 %v990, %v697
          %v1007 = vmul.f32 %v991, %v702
          %v1008 = vmul.f32 %v992, %v707
          %v1009 = vmul.f32 %v993, %v712
          %v1010 = vmul.f32 %v994, %v717
          %v1011 = vmul.f32 %v995, %v722
          %v1012 = vmul.f32 %v996, %v727
          %v1013 = vmul.f32 %v997, %v732
          %v1014 = vmul.f32 %v998, %v737
          %v1015 = vmul.f32 %v999, %v742
          %v1016 = vmul.f32 %v1000, %v747
          %v1017 = vmul.f32 %v1001, %v752
          %v1018 = vmul.f32 %v1002, %v757
          %v1019 = vmul.f32 %v1003, %v762
          %v1020 = vmul.f32 %v1004, %v767
          %v1021 = vmul.f32 %v1005, %v772
          %v1022 = vpack.c.bf16 %v1007, %v1006
          %v1023 = vpack.c.bf16 %v1009, %v1008
          %v1024 = vpack.c.bf16 %v1011, %v1010
          %v1025 = vpack.c.bf16 %v1013, %v1012
          %v1026 = vpack.c.bf16 %v1015, %v1014
          %v1027 = vpack.c.bf16 %v1017, %v1016
          %v1028 = vpack.c.bf16 %v1019, %v1018
          %v1029 = vpack.c.bf16 %v1021, %v1020
          %v1038 = vunpack.c.l.b16 %v1022
          %v1039 = vunpack.c.h.b16 %v1022
          %v1040 = vunpack.c.l.b16 %v1023
          %v1041 = vunpack.c.h.b16 %v1023
          %v1042 = vunpack.c.l.b16 %v1024
          %v1043 = vunpack.c.h.b16 %v1024
          %v1044 = vunpack.c.l.b16 %v1025
          %v1045 = vunpack.c.h.b16 %v1025
          %v1046 = vunpack.c.l.b16 %v1026
          %v1047 = vunpack.c.h.b16 %v1026
          %v1048 = vunpack.c.l.b16 %v1027
          %v1049 = vunpack.c.h.b16 %v1027
          %v1050 = vunpack.c.l.b16 %v1028
          %v1051 = vunpack.c.h.b16 %v1028
          %v1052 = vunpack.c.l.b16 %v1029
          %v1053 = vunpack.c.h.b16 %v1029
          %v1054 = vpack.c.b16 %v1038, %v1038
          %v1055 = vpack.c.b16 %v1039, %v1039
          %v1056 = vpack.c.b16 %v1040, %v1040
          %v1057 = vpack.c.b16 %v1041, %v1041
          %v1058 = vpack.c.b16 %v1042, %v1042
          %v1059 = vpack.c.b16 %v1043, %v1043
          %v1060 = vpack.c.b16 %v1044, %v1044
          %v1061 = vpack.c.b16 %v1045, %v1045
          %v1062 = vpack.c.b16 %v1046, %v1046
          %v1063 = vpack.c.b16 %v1047, %v1047
          %v1064 = vpack.c.b16 %v1048, %v1048
          %v1065 = vpack.c.b16 %v1049, %v1049
          %v1066 = vpack.c.b16 %v1050, %v1050
          %v1067 = vpack.c.b16 %v1051, %v1051
          %v1068 = vpack.c.b16 %v1052, %v1052
          %v1069 = vpack.c.b16 %v1053, %v1053
          %1086 = vst [vmem:[%s400] sm:$0xf] %v1054
          %1087 = vst [vmem:[%s400 + $0x4] sm:$0xf] %v1055
          %1088 = vst [vmem:[%s400 + $0x8] sm:$0xf] %v1056
          %1089 = vst [vmem:[%s400 + $0xc] sm:$0xf] %v1057
          %1090 = vst [vmem:[%s400 + $0x10] sm:$0xf] %v1058
          %1091 = vst [vmem:[%s400 + $0x14] sm:$0xf] %v1059
          %1092 = vst [vmem:[%s400 + $0x18] sm:$0xf] %v1060
          %1093 = vst [vmem:[%s400 + $0x1c] sm:$0xf] %v1061
          %1094 = vst [vmem:[%s400 + $0x20] sm:$0xf] %v1062
          %1095 = vst [vmem:[%s400 + $0x24] sm:$0xf] %v1063
          %1096 = vst [vmem:[%s400 + $0x28] sm:$0xf] %v1064
          %1097 = vst [vmem:[%s400 + $0x2c] sm:$0xf] %v1065
          %1098 = vst [vmem:[%s400 + $0x30] sm:$0xf] %v1066
          %1099 = vst [vmem:[%s400 + $0x34] sm:$0xf] %v1067
          %1100 = vst [vmem:[%s400 + $0x38] sm:$0xf] %v1068
          %1101 = vst [vmem:[%s400 + $0x3c] sm:$0xf] %v1069
        $region98: #{tpu_custom_call.1} parent=77 // pred_fallthru
          _
        %s1102 = sand.u32 %s192, 1
        %s1103 = scalar_lea.sflag [#allocation6], %s1102
        %s1104 = sand.u32 %s192, 1
        %s1105 = smul.addr %s1104, 64
        %s1106 = scalar_lea.vmem [#allocation9], %s1105
        // Predicated region
        $region99: #{tpu_custom_call.1} parent=77 // pred_check
          %p1107 = pneg %p202
        $region100: #{tpu_custom_call.1} parent=77 // pred_check_branch
          %1109 = sbr.rel (%p1107) target = $region102
        $region101: #{tpu_custom_call.1} parent=77 // pred_region
          %s1110 = smul.u32 16, %s28
          %s1112 = ssub.s32 1024, 1024
          %1113 = vsyncadd %s1103, %s1112
          %s1114 = smul.addr %s1110, 64
          %s1115 = scalar_lea.hbm %s6, %s1114
          %s1116 = sshll.u32 %s1106, 4
          %s1117 = int_to_ptr.vmem [resolvable:$true] %s1116
          %1122 = dma.vmem_to_hbm [thread:$0]  %s1117, 1024, %s1115, %s1103, 64, 64, 4
        $region102: #{tpu_custom_call.1} parent=77 // pred_fallthru
          _
      $region78: #{tpu_custom_call.1} parent=5 // pred_fallthru
        _
      %p1123 = scmp.le.s32.totalorder 2, %s19
      // Predicated region
      $region103: #{tpu_custom_call.1} parent=5 // pred_check
        %p1124 = pneg %p1123
      $region104: #{tpu_custom_call.1} parent=5 // pred_check_branch
        %1126 = sbr.rel (%p1124) target = $region106
      $region105: #{tpu_custom_call.1} parent=5 // pred_region
        %s1127 = ssub.s32 %s19, 2
        // Predicated region
        $region107: #{tpu_custom_call.1} parent=105 // pred_check
          %p1128 = pneg %p208
        $region108: #{tpu_custom_call.1} parent=105 // pred_check_branch
          %1130 = sbr.rel (%p1128) target = $region110
        $region109: #{tpu_custom_call.1} parent=105 // pred_region
          %s1131 = sand.u32 %s193, 1
          %s1132 = scalar_lea.sflag [#allocation6], %s1131
          %s1133 = sand.u32 %s193, 1
          %s1134 = smul.addr %s1133, 64
          %s1135 = scalar_lea.vmem [#allocation9], %s1134
          %1136 = dma.done %s1132, 1024
        $region110: #{tpu_custom_call.1} parent=105 // pred_fallthru
          _
      $region106: #{tpu_custom_call.1} parent=5 // pred_fallthru
        _
    $region6: #{tpu_custom_call.1} parent=1 // loop_footer
      %s23 = sadd.s32 1, %s19
    $region7: #{tpu_custom_call.1} parent=1 // loop_footer_branch
      %18 = sbr.rel target = $region3
    $region8: #{tpu_custom_call.1} parent=1 // loop_exit
      _
    %1137 = vsyncpa [#allocation5], 1
    %s1138 = scalar_lea.sflag [#allocation5], 1
    %1139 = vsyncpa %s1138, 1
    %1140 = vsyncpa [#allocation8], 1
    %s1141 = scalar_lea.sflag [#allocation8], 1
    %1142 = vsyncpa %s1141, 1
    %1143 = vsyncpa [#allocation6], 1
    %s1144 = scalar_lea.sflag [#allocation6], 1
    %1145 = vsyncpa %s1144, 1

</llo_original>
